<compile_context>
chip_gen: v7x
topology: tpu7x:2x2x1
jax: 0.10.0
libtpu: 0.0.40
codegen_flags: <defaults>
</compile_context>

<pallas_src>
import functools

import jax
import jax.numpy as jnp
from jax import lax
from jax.experimental import pallas as pl
from jax.experimental.pallas import tpu as pltpu

_NEG_BIG = -1e30  # large finite negative instead of -inf (NaN-safe masking)


# ---------------------------------------------------------------------------
# Kernel 1: fused QKV projection (one bf16 matmul per row tile)
# ---------------------------------------------------------------------------
def qkv_proj_kernel(x_ref, w_ref, q_ref, k_ref, v_ref, *, d_out, scale):
    x = x_ref[0]                                                       # (tm, d_in) bf16
    qkv = jnp.dot(x, w_ref[...], preferred_element_type=jnp.float32)   # (tm, 3*d_out) f32
    q_ref[0] = (qkv[:, :d_out] * scale).astype(q_ref.dtype)            # fold 1/sqrt(hd) into Q
    k_ref[0] = qkv[:, d_out:2 * d_out].astype(k_ref.dtype)
    v_ref[0] = qkv[:, 2 * d_out:].astype(v_ref.dtype)


def qkv_projection(x, wqkv, *, head_dim, tm):
    B, T, d_in = x.shape
    d_out = wqkv.shape[1] // 3
    scale = 1.0 / (head_dim ** 0.5)
    kernel = functools.partial(qkv_proj_kernel, d_out=d_out, scale=scale)
    out = jax.ShapeDtypeStruct((B, T, d_out), jnp.bfloat16)
    return pl.pallas_call(
        kernel,
        out_shape=(out, out, out),
        grid=(B, T // tm),
        in_specs=[
            pl.BlockSpec((1, tm, d_in), lambda b, i: (b, i, 0)),        # x row tile
            pl.BlockSpec((d_in, 3 * d_out), lambda b, i: (0, 0)),       # fused W_qkv (bf16)
        ],
        out_specs=(
            pl.BlockSpec((1, tm, d_out), lambda b, i: (b, i, 0)),       # Q (pre-scaled)
            pl.BlockSpec((1, tm, d_out), lambda b, i: (b, i, 0)),       # K
            pl.BlockSpec((1, tm, d_out), lambda b, i: (b, i, 0)),       # V
        ),
        compiler_params=pltpu.CompilerParams(
            dimension_semantics=("parallel", "parallel")),
    )(x, wqkv)


# ---------------------------------------------------------------------------
# Kernel 2: flash attention (online softmax) + fused output projection
# ---------------------------------------------------------------------------
def flash_attn_kernel(q_ref, k_ref, v_ref, wo_ref, bo_ref, o_ref,
                      acc_scr, m_scr, l_scr, *, num_heads, head_dim, tq, tk):
    qi = pl.program_id(1)
    ki = pl.program_id(2)
    nk = pl.num_programs(2)

    q_row0 = qi * tq
    k_col0 = ki * tk

    # ---- init (first kv tile of this (batch, q-tile)) ---------------------
    @pl.when(ki == 0)
    def _():
        acc_scr[...] = jnp.zeros_like(acc_scr)
        m_scr[...] = jnp.full_like(m_scr, _NEG_BIG)
        l_scr[...] = jnp.zeros_like(l_scr)

    def update(apply_mask):
        q = q_ref[0]                                   # (tq, d_out) bf16 (scaled)
        k = k_ref[0]                                   # (tk, d_out) bf16
        v = v_ref[0]                                   # (tk, d_out) bf16
        if apply_mask:
            row = lax.broadcasted_iota(jnp.int32, (tq, tk), 0) + q_row0
            col = lax.broadcasted_iota(jnp.int32, (tq, tk), 1) + k_col0
            mask_add = jnp.where(col > row, jnp.float32(_NEG_BIG), jnp.float32(0.0))
        for h in range(num_heads):
            lo = h * head_dim
            hi = lo + head_dim
            qh = q[:, lo:hi]                           # (tq, hd) bf16
            kh = k[:, lo:hi]                           # (tk, hd) bf16
            vh = v[:, lo:hi]                           # (tk, hd) bf16

            # q @ k^T (NT contraction) -- bf16 MXU, f32 accumulate
            s = lax.dot_general(qh, kh, (((1,), (1,)), ((), ())),
                                preferred_element_type=jnp.float32)   # (tq, tk)
            if apply_mask:
                s = s + mask_add

            m_prev = m_scr[:, h:h + 1]                 # (tq, 1) f32
            m_new = jnp.maximum(m_prev, jnp.max(s, axis=-1, keepdims=True))
            alpha = jnp.exp(m_prev - m_new)            # f32
            p = jnp.exp(s - m_new)                     # f32

            l_scr[:, h:h + 1] = alpha * l_scr[:, h:h + 1] + jnp.sum(p, axis=-1,
                                                                    keepdims=True)
            acc_scr[:, lo:hi] = alpha * acc_scr[:, lo:hi] + jnp.dot(
                p.astype(vh.dtype), vh, preferred_element_type=jnp.float32)
            m_scr[:, h:h + 1] = m_new

    # interior tile: every key in this tile is visible to every query row -> no mask
    @pl.when(k_col0 + (tk - 1) <= q_row0)
    def _():
        update(apply_mask=False)

    # diagonal-crossing tile: partially visible -> build & apply the causal mask
    @pl.when(jnp.logical_and(k_col0 + (tk - 1) > q_row0,
                             k_col0 <= q_row0 + (tq - 1)))
    def _():
        update(apply_mask=True)

    # fully-future tiles: no compute, and (via the clamped kv index_map) no DMA.

    # ---- finalize (last kv tile): normalize + fused output projection -----
    @pl.when(ki == nk - 1)
    def _():
        inv_l = pl.reciprocal(l_scr[...], approx=True)        # (tq, num_heads), EUP
        for h in range(num_heads):
            lo = h * head_dim
            hi = lo + head_dim
            acc_scr[:, lo:hi] = acc_scr[:, lo:hi] * inv_l[:, h:h + 1]
        ctx = acc_scr[...].astype(wo_ref.dtype)               # bf16 for the MXU
        out = jnp.dot(ctx, wo_ref[...],
                      preferred_element_type=jnp.float32) + bo_ref[...]
        o_ref[0] = out.astype(o_ref.dtype)


def flash_attention(q, k, v, wo, bo, *, num_heads, tq, tk, out_dtype):
    B, T, d_out = q.shape
    head_dim = d_out // num_heads
    kernel = functools.partial(flash_attn_kernel, num_heads=num_heads,
                               head_dim=head_dim, tq=tq, tk=tk)

    # Clamp the kv block index to the last causally-needed tile: fully-masked
    # future tiles keep the same block index, so the pipeline never re-fetches.
    def kv_index_map(b, qi, ki):
        last_needed = (qi * tq + tq - 1) // tk
        return (b, jnp.minimum(ki, last_needed), 0)

    return pl.pallas_call(
        kernel,
        out_shape=jax.ShapeDtypeStruct((B, T, d_out), out_dtype),
        grid=(B, T // tq, T // tk),
        in_specs=[
            pl.BlockSpec((1, tq, d_out), lambda b, qi, ki: (b, qi, 0)),   # Q (pre-scaled)
            pl.BlockSpec((1, tk, d_out), kv_index_map),                   # K
            pl.BlockSpec((1, tk, d_out), kv_index_map),                   # V
            pl.BlockSpec((d_out, d_out), lambda b, qi, ki: (0, 0)),       # out_proj weight
            pl.BlockSpec((1, d_out), lambda b, qi, ki: (0, 0)),           # out_proj bias
        ],
        out_specs=pl.BlockSpec((1, tq, d_out), lambda b, qi, ki: (b, qi, 0)),
        scratch_shapes=[
            pltpu.VMEM((tq, d_out), jnp.float32),       # context accumulator (f32)
            pltpu.VMEM((tq, num_heads), jnp.float32),   # running max, lane-dense
            pltpu.VMEM((tq, num_heads), jnp.float32),   # running denom, lane-dense
        ],
        compiler_params=pltpu.CompilerParams(
            dimension_semantics=("parallel", "parallel", "arbitrary")),
    )(q, k, v, wo, bo)


# ---------------------------------------------------------------------------
# One-time parameter preparation (hoisted out of the per-call path)
# ---------------------------------------------------------------------------
def prepare_params(wq, wk, wv, wo, bo, *, compute_dtype=jnp.bfloat16):
    wqkv = jnp.concatenate([wq, wk, wv], axis=1).astype(compute_dtype)
    return wqkv, wo.astype(compute_dtype), bo.reshape(1, -1).astype(jnp.float32)


def multi_head_attention(x, wqkv, wo, bo, *, num_heads, tq=None, tk=None, tm=None):
    B, T, d_in = x.shape
    d_out = wqkv.shape[1] // 3
    assert d_out % num_heads == 0
    head_dim = d_out // num_heads

    # 128 matches the v5e MXU; on v6e/v7x pass tq=tk=256 (bf16 matmuls) instead.
    if tq is None:
        tq = min(128, T)
    if tk is None:
        tk = min(128, T)
    if tm is None:
        tm = min(256, T)
    assert T % tq == 0 and T % tk == 0 and T % tm == 0, \
        "seq length must be divisible by tile sizes"

    x_bf = x.astype(wqkv.dtype)
    q, k, v = qkv_projection(x_bf, wqkv, head_dim=head_dim, tm=tm)
    return flash_attention(q, k, v, wo, bo, num_heads=num_heads,
                           tq=tq, tk=tk, out_dtype=x.dtype)


# ---------------------------------------------------------------------------
# Pure-JAX f32 reference (matches the PyTorch module)
# ---------------------------------------------------------------------------
def reference_mha(x, wq, wk, wv, wo, bo, *, num_heads):
    B, T, d_in = x.shape
    d_out = wq.shape[1]
    head_dim = d_out // num_heads
    q = (x @ wq).reshape(B, T, num_heads, head_dim).transpose(0, 2, 1, 3)
    k = (x @ wk).reshape(B, T, num_heads, head_dim).transpose(0, 2, 1, 3)
    v = (x @ wv).reshape(B, T, num_heads, head_dim).transpose(0, 2, 1, 3)
    scores = jnp.einsum('bhtd,bhsd->bhts', q, k) / (head_dim ** 0.5)
    mask = jnp.triu(jnp.ones((T, T), dtype=bool), k=1)
    scores = jnp.where(mask[None, None], -jnp.inf, scores)
    attn = jax.nn.softmax(scores, axis=-1)
    ctx = jnp.einsum('bhts,bhsd->bhtd', attn, v)
    ctx = ctx.transpose(0, 2, 1, 3).reshape(B, T, d_out)
    return ctx @ wo + bo


if __name__ == "__main__":
    # small shapes: batch=2, seq=16, d_in=32, d_out=32, num_heads=4 (head_dim=8)
    # tq=tk=tm=8 so the flash tiling (2 q-tiles x 2 kv-tiles) is actually exercised.
    B, T, d_in, d_out, num_heads = 2, 16, 32, 32, 4

    key = jax.random.PRNGKey(0)
    kx, kq, kk, kv, ko, kb = jax.random.split(key, 6)
    x  = jax.random.normal(kx, (B, T, d_in), dtype=jnp.float32)
    wq = jax.random.normal(kq, (d_in, d_out), dtype=jnp.float32) * 0.1
    wk = jax.random.normal(kk, (d_in, d_out), dtype=jnp.float32) * 0.1
    wv = jax.random.normal(kv, (d_in, d_out), dtype=jnp.float32) * 0.1
    wo = jax.random.normal(ko, (d_out, d_out), dtype=jnp.float32) * 0.1
    bo = jax.random.normal(kb, (d_out,), dtype=jnp.float32) * 0.1

    # one-time parameter prep (fused QKV weight, bf16 cast, 2D bias)
    wqkv_p, wo_p, bo_p = prepare_params(wq, wk, wv, wo, bo)

    out = multi_head_attention(x, wqkv_p, wo_p, bo_p, num_heads=num_heads,
                               tq=8, tk=8, tm=8)
    out = jax.block_until_ready(out)

    ref = reference_mha(x, wq, wk, wv, wo, bo, num_heads=num_heads)
    assert out.shape == (B, T, d_out)
    # bf16 MXU -> relaxed tolerance vs. the f32 reference
    err = float(jnp.max(jnp.abs(out - ref)))
    assert jnp.allclose(out, ref, atol=5e-2, rtol=5e-2), f"max abs err {err}"

    print("KERNEL_OK")
</pallas_src>

<mosaic_0001>
module attributes {stable_mosaic.version = 11 : i64} {
  func.func @qkv_proj_kernel(%arg0: i32, %arg1: i32, %arg2: memref<1x8x32xbf16, #tpu.memory_space<vmem>>, %arg3: memref<32x96xbf16, #tpu.memory_space<vmem>>, %arg4: memref<1x8x32xbf16, #tpu.memory_space<vmem>>, %arg5: memref<1x8x32xbf16, #tpu.memory_space<vmem>>, %arg6: memref<1x8x32xbf16, #tpu.memory_space<vmem>>) attributes {dimension_semantics = [#tpu.dimension_semantics<parallel>, #tpu.dimension_semantics<parallel>], iteration_bounds = array<i64: 2, 2>, scalar_prefetch = 0 : i64, scratch_operands = 0 : i64, tpu.core_type = #tpu.core_type<tc>, window_params = [{transform_indices = @transform_0, window_bounds = array<i64: 1, 8, 32>}, {pipeline_mode = #tpu.pipeline_mode<synchronous>, transform_indices = @transform_1, window_bounds = array<i64: 32, 96>}, {transform_indices = @transform_2, window_bounds = array<i64: 1, 8, 32>}, {transform_indices = @transform_3, window_bounds = array<i64: 1, 8, 32>}, {transform_indices = @transform_4, window_bounds = array<i64: 1, 8, 32>}]} {
    %c0 = arith.constant 0 : index
    %c0_0 = arith.constant 0 : index
    %c0_1 = arith.constant 0 : index
    %0 = vector.load %arg2[%c0, %c0_0, %c0_1] : memref<1x8x32xbf16, #tpu.memory_space<vmem>>, vector<1x8x32xbf16>
    %1 = vector.shape_cast %0 : vector<1x8x32xbf16> to vector<8x32xbf16>
    %c0_2 = arith.constant 0 : index
    %c0_3 = arith.constant 0 : index
    %2 = vector.load %arg3[%c0_2, %c0_3] : memref<32x96xbf16, #tpu.memory_space<vmem>>, vector<32x96xbf16>
    %cst = arith.constant dense<0.000000e+00> : vector<8x96xf32>
    %3 = tpu.matmul %1, %2, %cst {dimension_numbers = #tpu.dot_dimension_numbers<[1], [0], [0], [1], [0, 0, 1, 1], [], []>} : vector<8x32xbf16>, vector<32x96xbf16>, vector<8x96xf32> -> vector<8x96xf32>
    %4 = vector.extract_strided_slice %3 {offsets = [0, 0], sizes = [8, 32], strides = [1, 1]} : vector<8x96xf32> to vector<8x32xf32>
    %cst_4 = arith.constant 0.353553385 : f32
    %5 = vector.broadcast %cst_4 : f32 to vector<8x32xf32>
    %6 = arith.mulf %4, %5 : vector<8x32xf32>
    %7 = arith.truncf %6 : vector<8x32xf32> to vector<8x32xbf16>
    %c0_5 = arith.constant 0 : index
    %c0_6 = arith.constant 0 : index
    %c0_7 = arith.constant 0 : index
    %8 = vector.load %arg4[%c0_5, %c0_6, %c0_7] : memref<1x8x32xbf16, #tpu.memory_space<vmem>>, vector<1x8x32xbf16>
    %9 = vector.shape_cast %8 : vector<1x8x32xbf16> to vector<8x32xbf16>
    %10 = vector.shape_cast %7 : vector<8x32xbf16> to vector<1x8x32xbf16>
    tpu.vector_store %arg4[%c0_5, %c0_6, %c0_7], %10 {strides = array<i32>} : memref<1x8x32xbf16, #tpu.memory_space<vmem>>, vector<1x8x32xbf16>,
    %11 = vector.extract_strided_slice %3 {offsets = [0, 32], sizes = [8, 32], strides = [1, 1]} : vector<8x96xf32> to vector<8x32xf32>
    %12 = arith.truncf %11 : vector<8x32xf32> to vector<8x32xbf16>
    %c0_8 = arith.constant 0 : index
    %c0_9 = arith.constant 0 : index
    %c0_10 = arith.constant 0 : index
    %13 = vector.load %arg5[%c0_8, %c0_9, %c0_10] : memref<1x8x32xbf16, #tpu.memory_space<vmem>>, vector<1x8x32xbf16>
    %14 = vector.shape_cast %13 : vector<1x8x32xbf16> to vector<8x32xbf16>
    %15 = vector.shape_cast %12 : vector<8x32xbf16> to vector<1x8x32xbf16>
    tpu.vector_store %arg5[%c0_8, %c0_9, %c0_10], %15 {strides = array<i32>} : memref<1x8x32xbf16, #tpu.memory_space<vmem>>, vector<1x8x32xbf16>,
    %16 = vector.extract_strided_slice %3 {offsets = [0, 64], sizes = [8, 32], strides = [1, 1]} : vector<8x96xf32> to vector<8x32xf32>
    %17 = arith.truncf %16 : vector<8x32xf32> to vector<8x32xbf16>
    %c0_11 = arith.constant 0 : index
    %c0_12 = arith.constant 0 : index
    %c0_13 = arith.constant 0 : index
    %18 = vector.load %arg6[%c0_11, %c0_12, %c0_13] : memref<1x8x32xbf16, #tpu.memory_space<vmem>>, vector<1x8x32xbf16>
    %19 = vector.shape_cast %18 : vector<1x8x32xbf16> to vector<8x32xbf16>
    %20 = vector.shape_cast %17 : vector<8x32xbf16> to vector<1x8x32xbf16>
    tpu.vector_store %arg6[%c0_11, %c0_12, %c0_13], %20 {strides = array<i32>} : memref<1x8x32xbf16, #tpu.memory_space<vmem>>, vector<1x8x32xbf16>,
    return
  }
  func.func @transform_0(%arg0: i32, %arg1: i32) -> (i32, i32, i32) {
    %c0_i32 = arith.constant 0 : i32
    %c0_i32_0 = arith.constant 0 : i32
    return %arg0, %arg1, %c0_i32 : i32, i32, i32
  }
  func.func @transform_1(%arg0: i32, %arg1: i32) -> (i32, i32) {
    %c0_i32 = arith.constant 0 : i32
    %c0_i32_0 = arith.constant 0 : i32
    %c0_i32_1 = arith.constant 0 : i32
    return %c0_i32, %c0_i32_0 : i32, i32
  }
  func.func @transform_2(%arg0: i32, %arg1: i32) -> (i32, i32, i32) {
    %c0_i32 = arith.constant 0 : i32
    %c0_i32_0 = arith.constant 0 : i32
    return %arg0, %arg1, %c0_i32 : i32, i32, i32
  }
  func.func @transform_3(%arg0: i32, %arg1: i32) -> (i32, i32, i32) {
    %c0_i32 = arith.constant 0 : i32
    %c0_i32_0 = arith.constant 0 : i32
    return %arg0, %arg1, %c0_i32 : i32, i32, i32
  }
  func.func @transform_4(%arg0: i32, %arg1: i32) -> (i32, i32, i32) {
    %c0_i32 = arith.constant 0 : i32
    %c0_i32_0 = arith.constant 0 : i32
    return %arg0, %arg1, %c0_i32 : i32, i32, i32
  }
}

</mosaic_0001>

<llo_original>
// kernel: tpu_custom_call.1
$region0: #{tpu_custom_call.1}
  #allocation0 [shape = 'u32[]', space=smem, size = 0x4, offset = 0x4, fixed_abs, tag = 'smem constant byte address 0x4 - core index']
  #allocation1 [shape = 'u32[144,128]{1,0:T(1,128)}', space=vmem, size = 0x12000, scoped, tag = 'internal scratch']
  %s0 = inlined_call_operand.hbm [shape: bf16[2,16,32], index: 0, kind: input, shape index: {}]
  %s1 = inlined_call_operand.hbm [shape: bf16[32,96], index: 1, kind: input, shape index: {}]
  %s2 = inlined_call_operand.hbm [shape: bf16[2,16,32], index: 2, kind: output, shape index: {0}]
  %s3 = inlined_call_operand.hbm [shape: bf16[2,16,32], index: 3, kind: output, shape index: {1}]
  %s4 = inlined_call_operand.hbm [shape: bf16[2,16,32], index: 4, kind: output, shape index: {2}]
  %5 = xla_tuple %s2, %s3, %s4
  %s6 = sld [smem:[#allocation0]]
  $region65: #{tpu_custom_call.1} parent=0
    _
  %s8 = ssub.s32 1, %s6
  %s9 = scalar_select 0, %s8, %s6
  $region1: #{tpu_custom_call.1} parent=0
    #allocation2 [shape = 'u8[4096]{0}', space=vmem, size = 0x1000, scoped, tag = 'input window, operand 0']
    #allocation3 [shape = 's32[2]{0}', space=sflag, size = 0x8, scoped, tag = 'scoped memory for tpu_custom_call.1']
    #allocation4 [shape = 's32[2]{0}', space=sflag, size = 0x8, scoped, tag = 'scoped memory for tpu_custom_call.1']
    #allocation5 [shape = 'u8[8192]{0}', space=vmem, size = 0x2000, scoped, tag = 'input window, operand 1, single buffered']
    #allocation6 [shape = 's32[1]{0}', space=sflag, size = 0x4, scoped, tag = 'scoped memory for tpu_custom_call.1']
    #allocation7 [shape = 'u8[4096]{0}', space=vmem, size = 0x1000, scoped, tag = 'output window, operand 0']
    #allocation8 [shape = 'u8[4096]{0}', space=vmem, size = 0x1000, scoped, tag = 'output window, operand 1']
    #allocation9 [shape = 's32[2]{0}', space=sflag, size = 0x8, scoped, tag = 'scoped memory for tpu_custom_call.1']
    #allocation10 [shape = 'u8[4096]{0}', space=vmem, size = 0x1000, scoped, tag = 'output window, operand 2']
    %10 = vsyncpa [#allocation3], 0
    %s11 = scalar_lea.sflag [#allocation3], 1
    %12 = vsyncpa %s11, 0
    %13 = vsyncpa [#allocation6], 0
    %14 = vsyncpa [#allocation4], 0
    %s15 = scalar_lea.sflag [#allocation4], 1
    %16 = vsyncpa %s15, 0
    %17 = vsyncpa [#allocation9], 0
    %s18 = scalar_lea.sflag [#allocation9], 1
    %19 = vsyncpa %s18, 0
    loop: start=0, step=1, limit=6
    $region2: #{tpu_custom_call.1} parent=1 // loop_pre_header
      _
    $region3: #{tpu_custom_call.1} parent=1 // loop_header
      %s21 = sphi 0, %s25
      %p22 = scmp.ge.s32.totalorder %s21, 6
      %s28 = sphi 0, %s40
      %s29 = sphi 0, %s36
      %s30 = sphi 0, %s28
      %s31 = sphi 0, %s29
      %s32 = sphi 0, %s30
      %s33 = sphi 0, %s31
      %s45 = sphi 0, %s47
      %s48 = sphi 0, %s45
      %s49 = sphi 0, %s48
      %s65 = sphi 0, %s49
      %s69 = sphi 0, %s69
      %s71 = sphi 0, %s69
      %s72 = sphi 0, %s71
      %s86 = sphi 0, %s72
      %s94 = sphi 0, %s96
      %s97 = sphi 0, %s94
      %s98 = sphi 0, %s97
      %s114 = sphi 0, %s98
      %s122 = sphi 0, %s124
      %s125 = sphi 0, %s122
      %s126 = sphi 0, %s125
      %s142 = sphi 0, %s126
      %s150 = sphi 0, %s152
      %s153 = sphi 0, %s150
      %s154 = sphi 0, %s153
      %s170 = sphi 0, %s154
    $region4: #{tpu_custom_call.1} parent=1 // loop_header_branch
      %24 = sbr.rel (%p22) target = $region8
    $region5: #{tpu_custom_call.1} parent=1 // loop_body
      %s26 = ssub.s32 %s21, 1
      %s27 = ssub.s32 %s21, 2
      %s34 = sadd.s32 1, %s29
      %p35 = scmp.ge.s32.totalorder %s34, 2
      %s36 = scalar_select %p35, 0, %s34
      %s37 = sadd.s32 1, %s28
      %s38 = scalar_select %p35, %s37, %s28
      %p39 = scmp.ge.s32.totalorder %s38, 2
      %s40 = scalar_select %p39, 0, %s38
      %s41 = ssub.s32 %s28, %s40
      %s42 = ssub.s32 %s29, %s36
      %s43 = sor.u32 %s41, %s42
      %p44 = scmp.eq.s32.totalorder %s43, 0
      %s46 = sadd.s32 %s45, 1
      %s47 = scalar_select %p44, %s45, %s46
      %p50 = pneg %p44
      %p51 = scmp.eq.s32.totalorder %s21, 3
      %p52 = por %p50, %p51
      %p53 = scmp.ne.s32.totalorder %s45, %s48
      %p54 = scmp.eq.s32.totalorder %s21, 0
      %p55 = por %p53, %p54
      %p56 = scmp.ne.s32.totalorder %s45, %s48
      %p57 = scmp.eq.s32.totalorder %s26, 3
      %p58 = por %p56, %p57
      %p59 = scmp.ne.s32.totalorder %s48, %s49
      %p60 = scmp.eq.s32.totalorder %s26, 0
      %p61 = por %p59, %p60
      %p62 = scmp.ne.s32.totalorder %s48, %s49
      %p63 = scmp.eq.s32.totalorder %s27, 3
      %p64 = por %p62, %p63
      %p66 = scmp.ne.s32.totalorder %s49, %s65
      %p67 = scmp.eq.s32.totalorder %s27, 0
      %p68 = por %p66, %p67
      %s70 = sadd.s32 %s69, 1
      %p73 = scmp.eq.s32.totalorder %s21, 3
      %p74 = scmp.ne.s32.totalorder %s69, %s71
      %p75 = scmp.eq.s32.totalorder %s21, 0
      %p76 = por %p74, %p75
      %p77 = scmp.ne.s32.totalorder %s69, %s71
      %p78 = scmp.eq.s32.totalorder %s26, 3
      %p79 = por %p77, %p78
      %p80 = scmp.ne.s32.totalorder %s71, %s72
      %p81 = scmp.eq.s32.totalorder %s26, 0
      %p82 = por %p80, %p81
      %p83 = scmp.ne.s32.totalorder %s71, %s72
      %p84 = scmp.eq.s32.totalorder %s27, 3
      %p85 = por %p83, %p84
      %p87 = scmp.ne.s32.totalorder %s72, %s86
      %p88 = scmp.eq.s32.totalorder %s27, 0
      %p89 = por %p87, %p88
      %s90 = ssub.s32 %s28, %s40
      %s91 = ssub.s32 %s29, %s36
      %s92 = sor.u32 %s90, %s91
      %p93 = scmp.eq.s32.totalorder %s92, 0
      %s95 = sadd.s32 %s94, 1
      %s96 = scalar_select %p93, %s94, %s95
      %p99 = pneg %p93
      %p100 = scmp.eq.s32.totalorder %s21, 3
      %p101 = por %p99, %p100
      %p102 = scmp.ne.s32.totalorder %s94, %s97
      %p103 = scmp.eq.s32.totalorder %s21, 0
      %p104 = por %p102, %p103
      %p105 = scmp.ne.s32.totalorder %s94, %s97
      %p106 = scmp.eq.s32.totalorder %s26, 3
      %p107 = por %p105, %p106
      %p108 = scmp.ne.s32.totalorder %s97, %s98
      %p109 = scmp.eq.s32.totalorder %s26, 0
      %p110 = por %p108, %p109
      %p111 = scmp.ne.s32.totalorder %s97, %s98
      %p112 = scmp.eq.s32.totalorder %s27, 3
      %p113 = por %p111, %p112
      %p115 = scmp.ne.s32.totalorder %s98, %s114
      %p116 = scmp.eq.s32.totalorder %s27, 0
      %p117 = por %p115, %p116
      %s118 = ssub.s32 %s28, %s40
      %s119 = ssub.s32 %s29, %s36
      %s120 = sor.u32 %s118, %s119
      %p121 = scmp.eq.s32.totalorder %s120, 0
      %s123 = sadd.s32 %s122, 1
      %s124 = scalar_select %p121, %s122, %s123
      %p127 = pneg %p121
      %p128 = scmp.eq.s32.totalorder %s21, 3
      %p129 = por %p127, %p128
      %p130 = scmp.ne.s32.totalorder %s122, %s125
      %p131 = scmp.eq.s32.totalorder %s21, 0
      %p132 = por %p130, %p131
      %p133 = scmp.ne.s32.totalorder %s122, %s125
      %p134 = scmp.eq.s32.totalorder %s26, 3
      %p135 = por %p133, %p134
      %p136 = scmp.ne.s32.totalorder %s125, %s126
      %p137 = scmp.eq.s32.totalorder %s26, 0
      %p138 = por %p136, %p137
      %p139 = scmp.ne.s32.totalorder %s125, %s126
      %p140 = scmp.eq.s32.totalorder %s27, 3
      %p141 = por %p139, %p140
      %p143 = scmp.ne.s32.totalorder %s126, %s142
      %p144 = scmp.eq.s32.totalorder %s27, 0
      %p145 = por %p143, %p144
      %s146 = ssub.s32 %s28, %s40
      %s147 = ssub.s32 %s29, %s36
      %s148 = sor.u32 %s146, %s147
      %p149 = scmp.eq.s32.totalorder %s148, 0
      %s151 = sadd.s32 %s150, 1
      %s152 = scalar_select %p149, %s150, %s151
      %p155 = pneg %p149
      %p156 = scmp.eq.s32.totalorder %s21, 3
      %p157 = por %p155, %p156
      %p158 = scmp.ne.s32.totalorder %s150, %s153
      %p159 = scmp.eq.s32.totalorder %s21, 0
      %p160 = por %p158, %p159
      %p161 = scmp.ne.s32.totalorder %s150, %s153
      %p162 = scmp.eq.s32.totalorder %s26, 3
      %p163 = por %p161, %p162
      %p164 = scmp.ne.s32.totalorder %s153, %s154
      %p165 = scmp.eq.s32.totalorder %s26, 0
      %p166 = por %p164, %p165
      %p167 = scmp.ne.s32.totalorder %s153, %s154
      %p168 = scmp.eq.s32.totalorder %s27, 3
      %p169 = por %p167, %p168
      %p171 = scmp.ne.s32.totalorder %s154, %s170
      %p172 = scmp.eq.s32.totalorder %s27, 0
      %p173 = por %p171, %p172
      %p174 = scmp.le.s32.totalorder 1, %s21
      %p175 = scmp.lt.s32.totalorder %s21, 5
      %p176 = pnand %p174, %p175
      %p177 = pneg %p176
      // Predicated region
      $region9: #{tpu_custom_call.1} parent=5 // pred_check
        _
      $region10: #{tpu_custom_call.1} parent=5 // pred_check_branch
        %179 = sbr.rel (%p176) target = $region12
      $region11: #{tpu_custom_call.1} parent=5 // pred_region
        %s180 = ssub.s32 %s21, 1
        // Predicated region
        $region13: #{tpu_custom_call.1} parent=11 // pred_check
          %p181 = pneg %p82
        $region14: #{tpu_custom_call.1} parent=11 // pred_check_branch
          %183 = sbr.rel (%p181) target = $region16
        $region15: #{tpu_custom_call.1} parent=11 // pred_region
          %s185 = ssub.s32 256, 256
          %186 = vsyncadd [#allocation6], %s185
          %s187 = sshll.u32 [#allocation5], 4
          %s188 = int_to_ptr.vmem [resolvable:$true] %s187
          %193 = dma.hbm_to_vmem [thread:$0]  %s1, 256, %s188, [#allocation6], 64, 64, 4
        $region16: #{tpu_custom_call.1} parent=11 // pred_fallthru
          _
      $region12: #{tpu_custom_call.1} parent=5 // pred_fallthru
        _
      %p194 = scmp.lt.s32.totalorder %s21, 4
      // Predicated region
      $region17: #{tpu_custom_call.1} parent=5 // pred_check
        %p195 = pneg %p194
      $region18: #{tpu_custom_call.1} parent=5 // pred_check_branch
        %197 = sbr.rel (%p195) target = $region20
      $region19: #{tpu_custom_call.1} parent=5 // pred_region
        // Predicated region
        $region21: #{tpu_custom_call.1} parent=19 // pred_check
          %p198 = pneg %p55
        $region22: #{tpu_custom_call.1} parent=19 // pred_check_branch
          %200 = sbr.rel (%p198) target = $region24
        $region23: #{tpu_custom_call.1} parent=19 // pred_region
          %s201 = sand.u32 %s45, 1
          %s202 = scalar_lea.sflag [#allocation3], %s201
          %s203 = sand.u32 %s45, 1
          %s204 = smul.addr %s203, 4
          %s205 = scalar_lea.vmem [#allocation2], %s204
          %s207 = ssub.s32 64, 64
          %208 = vsyncadd %s202, %s207
          %s209 = smul.addr %s28, 2
          %s210 = sadd.s32 %s29, %s209
          %s211 = smul.addr %s210, 64
          %s212 = scalar_lea.hbm %s0, %s211
          %s214 = sshll.u32 %s205, 4
          %s215 = int_to_ptr.vmem [resolvable:$true] %s214
          %217 = dma.hbm_to_vmem [thread:$0]  %s212, 64, %s215, %s202
        $region24: #{tpu_custom_call.1} parent=19 // pred_fallthru
          _
      $region20: #{tpu_custom_call.1} parent=5 // pred_fallthru
        _
      %p218 = scmp.le.s32.totalorder 1, %s21
      %p219 = scmp.lt.s32.totalorder %s21, 5
      %p220 = pnand %p218, %p219
      %p221 = pneg %p220
      // Predicated region
      $region25: #{tpu_custom_call.1} parent=5 // pred_check
        _
      $region26: #{tpu_custom_call.1} parent=5 // pred_check_branch
        %223 = sbr.rel (%p220) target = $region28
      $region27: #{tpu_custom_call.1} parent=5 // pred_region
        %s224 = ssub.s32 %s21, 1
        %s225 = sand.u32 %s48, 1
        %s226 = scalar_lea.sflag [#allocation3], %s225
        %s227 = sand.u32 %s48, 1
        %s228 = smul.addr %s227, 4
        %s229 = scalar_lea.vmem [#allocation2], %s228
        // Predicated region
        $region29: #{tpu_custom_call.1} parent=27 // pred_check
          %p230 = pneg %p61
        $region30: #{tpu_custom_call.1} parent=27 // pred_check_branch
          %232 = sbr.rel (%p230) target = $region32
        $region31: #{tpu_custom_call.1} parent=27 // pred_region
          %233 = dma.done %s226, 64
        $region32: #{tpu_custom_call.1} parent=27 // pred_fallthru
          _
        // Predicated region
        $region33: #{tpu_custom_call.1} parent=27 // pred_check
          %p234 = pneg %p82
        $region34: #{tpu_custom_call.1} parent=27 // pred_check_branch
          %236 = sbr.rel (%p234) target = $region36
        $region35: #{tpu_custom_call.1} parent=27 // pred_region
          %237 = dma.done [#allocation6], 256
        $region36: #{tpu_custom_call.1} parent=27 // pred_fallthru
          _
        %s238 = sand.u32 %s48, 1
        %s239 = scalar_lea.sflag [#allocation3], %s238
        %s240 = sand.u32 %s48, 1
        %s241 = smul.addr %s240, 4
        %s242 = scalar_lea.vmem [#allocation2], %s241
        %p243 = pneg %p61
        %p244 = pneg %p58
        %p245 = pneg %p82
        %p246 = pneg %p79
        %p247 = pneg %p110
        %p248 = pneg %p107
        %s249 = sand.u32 %s97, 1
        %s250 = scalar_lea.sflag [#allocation4], %s249
        %s251 = sand.u32 %s97, 1
        %s252 = smul.addr %s251, 4
        %s253 = scalar_lea.vmem [#allocation7], %s252
        %p254 = pneg %p138
        %p255 = pneg %p135
        %s256 = sand.u32 %s26, 1
        %s257 = scalar_lea.sflag [#allocation9], %s256
        %s258 = sand.u32 %s125, 1
        %s259 = smul.addr %s258, 4
        %s260 = scalar_lea.vmem [#allocation8], %s259
        %p261 = pneg %p166
        %p262 = pneg %p163
        %s263 = sand.u32 %s26, 1
        %s264 = scalar_lea.sflag [#allocation9], %s263
        %s265 = sand.u32 %s153, 1
        %s266 = smul.addr %s265, 4
        %s267 = scalar_lea.vmem [#allocation10], %s266
        %v269 = vld [vmem:[%s229] sm:$0xf]
        %v270 = vld [vmem:[#allocation5] sm:$0xf]
        %v271 = vld [vmem:[#allocation5 + $0x4] sm:$0xf]
        %v272 = vld [vmem:[#allocation5 + $0x8] sm:$0xf]
        %v273 = vld [vmem:[#allocation5 + $0xc] sm:$0xf]
        %v278 = vunpack.c.l.b16 %v270
        %v279 = vunpack.c.l.b16 %v271
        %v280 = vunpack.c.l.b16 %v272
        %v281 = vunpack.c.l.b16 %v273
        %v282 = vpack.c.b16 %v279, %v278
        %v283 = vpack.c.b16 %v281, %v280
        %vm286 = vcmask 261120
        %v288 = vsel %vm286, %v269, 0
        %290 = vmatprep.subr.bf16.mxu0 0
        %291 = vmatpush1.bf16.msra.mxu0 %v282
        %292 = vmatprep.subr.bf16.mxu0 0
        %293 = vmatpush1.bf16.msra.mxu0 %v283
        %294 = vmatprep.subr.bf16.mxu0 0
        %295 = vmatpush1.bf16.msra.mxu0 0
        %296 = vmatprep.subr.bf16.mxu0 0
        %297 = vmatpush1.bf16.msra.mxu0 0
        %298 = vmatprep.subr.bf16.mxu0 0
        %299 = vmatpush1.bf16.msra.mxu0 0
        %300 = vmatprep.subr.bf16.mxu0 0
        %301 = vmatpush1.bf16.msra.mxu0 0
        %302 = vmatprep.subr.bf16.mxu0 0
        %303 = vmatpush1.bf16.msra.mxu0 0
        %304 = vmatprep.subr.bf16.mxu0 0
        %305 = vmatpush1.bf16.msra.mxu0 0
        %306 = vmatprep.subr.bf16.mxu0 0
        %307 = vmatpush1.bf16.msra.mxu0 0
        %308 = vmatprep.subr.bf16.mxu0 0
        %309 = vmatpush1.bf16.msra.mxu0 0
        %310 = vmatprep.subr.bf16.mxu0 0
        %311 = vmatpush1.bf16.msra.mxu0 0
        %312 = vmatprep.subr.bf16.mxu0 0
        %313 = vmatpush1.bf16.msra.mxu0 0
        %314 = vmatprep.subr.bf16.mxu0 0
        %315 = vmatpush1.bf16.msra.mxu0 0
        %316 = vmatprep.subr.bf16.mxu0 0
        %317 = vmatpush1.bf16.msra.mxu0 0
        %318 = vmatprep.subr.bf16.mxu0 0
        %319 = vmatpush1.bf16.msra.mxu0 0
        %320 = vmatprep.subr.bf16.mxu0 0
        %321 = vmatpush1.bf16.msra.mxu0 0
        %322 = vmatprep.mubr.bf16.mxu0 0
        %323 = vmatmul.mubr.bf16.gmra.mrb[0].mxu0 %v288
        %v324 = vpop.f32.mrb[0].mxu0
        %v325 = vadd.f32 0.0, %v324
        %v326 = vpop.f32.mrb[0].mxu0
        %v327 = vpop.f32.mrb[0].mxu0
        %v328 = vpop.f32.mrb[0].mxu0
        %329 = vdwg.mxu0
        %v330 = vmul.f32 %v325, 0.35355338
        %v331 = vpack.c.bf16 %v330, %v330
        %vm332 = vcmask 257024
        %333 = vst.msk [vmem:[%s253] sm:$0xf] %vm332, %v331
        %v334 = vpack.c.bf16 %v325, %v325
        %v336 = vunpack.c.l.b16 %v334
        %v337 = vpack.c.b16 %v336, %v336
        %338 = vrot.lane.b32.xlu0 %v337, 96
        %v339 = vpop.permute.xlu0 %338
        %341 = vst.msk [vmem:[%s260] sm:$0xf] %vm332, %v339
        %342 = vrot.lane.b32.xlu0 %v337, 64
        %v343 = vpop.permute.xlu0 %342
        %345 = vst.msk [vmem:[%s267] sm:$0xf] %vm332, %v343
        %s346 = sand.u32 %s97, 1
        %s347 = scalar_lea.sflag [#allocation4], %s346
        %s348 = sand.u32 %s97, 1
        %s349 = smul.addr %s348, 4
        %s350 = scalar_lea.vmem [#allocation7], %s349
        %s351 = sand.u32 %s26, 1
        %s352 = scalar_lea.sflag [#allocation9], %s351
        %s353 = sand.u32 %s125, 1
        %s354 = smul.addr %s353, 4
        %s355 = scalar_lea.vmem [#allocation8], %s354
        %s356 = sand.u32 %s26, 1
        %s357 = scalar_lea.sflag [#allocation9], %s356
        %s358 = sand.u32 %s153, 1
        %s359 = smul.addr %s358, 4
        %s360 = scalar_lea.vmem [#allocation10], %s359
        // Predicated region
        $region37: #{tpu_custom_call.1} parent=27 // pred_check
          %p361 = pneg %p107
        $region38: #{tpu_custom_call.1} parent=27 // pred_check_branch
          %363 = sbr.rel (%p361) target = $region40
        $region39: #{tpu_custom_call.1} parent=27 // pred_region
          %s365 = ssub.s32 64, 64
          %366 = vsyncadd %s347, %s365
          %s367 = smul.addr %s30, 2
          %s368 = sadd.s32 %s31, %s367
          %s369 = smul.addr %s368, 64
          %s370 = scalar_lea.hbm %s2, %s369
          %s372 = sshll.u32 %s350, 4
          %s373 = int_to_ptr.vmem [resolvable:$true] %s372
          %375 = dma.vmem_to_hbm [thread:$0]  %s373, 64, %s370, %s347
        $region40: #{tpu_custom_call.1} parent=27 // pred_fallthru
          _
        // Predicated region
        $region41: #{tpu_custom_call.1} parent=27 // pred_check
          %p376 = pneg %p135
        $region42: #{tpu_custom_call.1} parent=27 // pred_check_branch
          %378 = sbr.rel (%p376) target = $region44
        $region43: #{tpu_custom_call.1} parent=27 // pred_region
          %s380 = ssub.s32 64, 64
          %381 = vsyncadd %s352, %s380
          %s382 = smul.addr %s30, 2
          %s383 = sadd.s32 %s31, %s382
          %s384 = smul.addr %s383, 64
          %s385 = scalar_lea.hbm %s3, %s384
          %s387 = sshll.u32 %s355, 4
          %s388 = int_to_ptr.vmem [resolvable:$true] %s387
          %390 = dma.vmem_to_hbm [thread:$0]  %s388, 64, %s385, %s352
        $region44: #{tpu_custom_call.1} parent=27 // pred_fallthru
          _
        // Predicated region
        $region45: #{tpu_custom_call.1} parent=27 // pred_check
          %p391 = pneg %p163
        $region46: #{tpu_custom_call.1} parent=27 // pred_check_branch
          %393 = sbr.rel (%p391) target = $region48
        $region47: #{tpu_custom_call.1} parent=27 // pred_region
          %s395 = ssub.s32 64, 64
          %396 = vsyncadd %s357, %s395
          %s397 = smul.addr %s30, 2
          %s398 = sadd.s32 %s31, %s397
          %s399 = smul.addr %s398, 64
          %s400 = scalar_lea.hbm %s4, %s399
          %s402 = sshll.u32 %s360, 4
          %s403 = int_to_ptr.vmem [resolvable:$true] %s402
          %405 = dma.vmem_to_hbm [thread:$0]  %s403, 64, %s400, %s357
        $region48: #{tpu_custom_call.1} parent=27 // pred_fallthru
          _
      $region28: #{tpu_custom_call.1} parent=5 // pred_fallthru
        _
      %p406 = scmp.le.s32.totalorder 2, %s21
      // Predicated region
      $region49: #{tpu_custom_call.1} parent=5 // pred_check
        %p407 = pneg %p406
      $region50: #{tpu_custom_call.1} parent=5 // pred_check_branch
        %409 = sbr.rel (%p407) target = $region52
      $region51: #{tpu_custom_call.1} parent=5 // pred_region
        %s410 = ssub.s32 %s21, 2
        // Predicated region
        $region53: #{tpu_custom_call.1} parent=51 // pred_check
          %p411 = pneg %p113
        $region54: #{tpu_custom_call.1} parent=51 // pred_check_branch
          %413 = sbr.rel (%p411) target = $region56
        $region55: #{tpu_custom_call.1} parent=51 // pred_region
          %s414 = sand.u32 %s98, 1
          %s415 = scalar_lea.sflag [#allocation4], %s414
          %s416 = sand.u32 %s98, 1
          %s417 = smul.addr %s416, 4
          %s418 = scalar_lea.vmem [#allocation7], %s417
          %419 = dma.done %s415, 64
        $region56: #{tpu_custom_call.1} parent=51 // pred_fallthru
          _
        // Predicated region
        $region57: #{tpu_custom_call.1} parent=51 // pred_check
          %p420 = pneg %p141
        $region58: #{tpu_custom_call.1} parent=51 // pred_check_branch
          %422 = sbr.rel (%p420) target = $region60
        $region59: #{tpu_custom_call.1} parent=51 // pred_region
          %s423 = sand.u32 %s27, 1
          %s424 = scalar_lea.sflag [#allocation9], %s423
          %s425 = sand.u32 %s126, 1
          %s426 = smul.addr %s425, 4
          %s427 = scalar_lea.vmem [#allocation8], %s426
          %428 = dma.done %s424, 64
        $region60: #{tpu_custom_call.1} parent=51 // pred_fallthru
          _
        // Predicated region
        $region61: #{tpu_custom_call.1} parent=51 // pred_check
          %p429 = pneg %p169
        $region62: #{tpu_custom_call.1} parent=51 // pred_check_branch
          %431 = sbr.rel (%p429) target = $region64
        $region63: #{tpu_custom_call.1} parent=51 // pred_region
          %s432 = sand.u32 %s27, 1
          %s433 = scalar_lea.sflag [#allocation9], %s432
          %s434 = sand.u32 %s154, 1
          %s435 = smul.addr %s434, 4
          %s436 = scalar_lea.vmem [#allocation10], %s435
          %437 = dma.done %s433, 64
        $region64: #{tpu_custom_call.1} parent=51 // pred_fallthru
          _
      $region52: #{tpu_custom_call.1} parent=5 // pred_fallthru
        _
    $region6: #{tpu_custom_call.1} parent=1 // loop_footer
      %s25 = sadd.s32 1, %s21
    $region7: #{tpu_custom_call.1} parent=1 // loop_footer_branch
      %20 = sbr.rel target = $region3
    $region8: #{tpu_custom_call.1} parent=1 // loop_exit
      _
    %438 = vsyncpa [#allocation3], 1
    %s439 = scalar_lea.sflag [#allocation3], 1
    %440 = vsyncpa %s439, 1
    %441 = vsyncpa [#allocation6], 1
    %442 = vsyncpa [#allocation4], 1
    %s443 = scalar_lea.sflag [#allocation4], 1
    %444 = vsyncpa %s443, 1
    %445 = vsyncpa [#allocation9], 1
    %s446 = scalar_lea.sflag [#allocation9], 1
    %447 = vsyncpa %s446, 1

</llo_original>
